<compile_context>
chip_gen: v5e
topology: v5e:2x2
jax: 0.10.0
libtpu: 0.0.40
codegen_flags: <defaults>
</compile_context>

<pallas_src>
import functools

import jax
import jax.numpy as jnp
from jax.experimental import pallas as pl
from jax.experimental.pallas import tpu as pltpu

# ---- static model configuration (small, TPU-tile friendly) -----------------
SUBSAMPLE = 128     # audio samples folded into one output frame (subsampling)
D_MODEL   = 128     # conformer model dim
D_FFN     = 256     # feed-forward hidden dim
SSL_DIM   = 128     # output embedding dim (ssl_dim)
TARGET_TILE_ROWS = 2048   # rows (output frames) per grid tile when M is large


# ---------------------------------------------------------------------------
# Fused encoder + per-row nonzero-count kernel (grid over flattened M tiles)
#   h0  = relu(frames @ W_in + b_in)
#   ffn = relu(h0 @ W1 + b1) @ W2 + b2
#   h   = h0 + 0.5 * ffn              (conformer half-FFN residual)
#   out = h @ W_out + b_out           -> (TR, ssl_dim), stored as bf16
#   cnt = sum_over_samples(frames != 0) -> (TR, 1)   (fused lengths reduction)
# ---------------------------------------------------------------------------
def _encoder_kernel(xf_ref, w_in_ref, b_in_ref, w1_ref, b1_ref,
                    w2_ref, b2_ref, w_out_ref, b_out_ref,
                    o_ref, cnt_ref):
    frames_raw = xf_ref[...]                                   # (TR, S), raw dtype
    # fused lengths reduction: audio read from HBM only once; count on the raw
    # dtype so (x != 0) semantics match the reference exactly.
    nz = (frames_raw != 0).astype(jnp.int32)
    cnt_ref[...] = jnp.sum(nz, axis=1, keepdims=True)          # (TR, 1) int32

    # bf16 matmul inputs, f32 MXU accumulation, f32 elementwise epilogue
    frames = frames_raw.astype(jnp.bfloat16)
    h0 = jnp.dot(frames, w_in_ref[...], preferred_element_type=jnp.float32)
    h0 = jnp.maximum(h0 + b_in_ref[...], 0.0)                  # (TR, D_MODEL) f32

    t = jnp.dot(h0.astype(jnp.bfloat16), w1_ref[...],
                preferred_element_type=jnp.float32)
    t = jnp.maximum(t + b1_ref[...], 0.0)                      # (TR, D_FFN) f32
    ffn = jnp.dot(t.astype(jnp.bfloat16), w2_ref[...],
                  preferred_element_type=jnp.float32) + b2_ref[...]

    h = h0 + 0.5 * ffn                                         # (TR, D_MODEL) f32
    out = jnp.dot(h.astype(jnp.bfloat16), w_out_ref[...],
                  preferred_element_type=jnp.float32)
    # bf16 store: halves kernel-side hidden write traffic; the wrapper fuses
    # the f32 upcast into the channels-first transpose (review Option B).
    o_ref[...] = (out + b_out_ref[...]).astype(o_ref.dtype)    # (TR, SSL_DIM) bf16


# ---------------------------------------------------------------------------
# Parameters (deterministic synthetic init; matmul weights stored in bf16)
# ---------------------------------------------------------------------------
def init_params(key):
    ks = jax.random.split(key, 4)
    scale = 0.02
    f = lambda k, shp: (jax.random.normal(k, shp, jnp.float32) * scale).astype(jnp.bfloat16)
    return dict(
        w_in=f(ks[0], (SUBSAMPLE, D_MODEL)),
        b_in=jnp.zeros((1, D_MODEL), jnp.float32),
        w1=f(ks[1], (D_MODEL, D_FFN)),
        b1=jnp.zeros((1, D_FFN), jnp.float32),
        w2=f(ks[2], (D_FFN, D_MODEL)),
        b2=jnp.zeros((1, D_MODEL), jnp.float32),
        w_out=f(ks[3], (D_MODEL, SSL_DIM)),
        b_out=jnp.zeros((1, SSL_DIM), jnp.float32),
    )


def _choose_tile_rows(M, target=TARGET_TILE_ROWS):
    """Rows of (B*T_out) frames per grid tile.

    * single tile (block == full array) when M is too small to split legally;
    * otherwise 8-sublane-aligned and at least 2 tiles (v7x megacore), as large
      as the target allows (bigger tiles amortize per-grid-step overhead).
    """
    if M <= 8:
        return M
    r = min(target, M // 2)          # guarantee >= 2 tiles
    r = max(8, (r // 8) * 8)         # sublane (8) alignment for multi-tile blocks
    return r


# ---------------------------------------------------------------------------
# Forward wrapper
# ---------------------------------------------------------------------------
@jax.jit
def indic_conformer_feature(input_ids, params):
    # rearrange 'b 1 t -> b t'
    if input_ids.ndim == 3:
        input_ids = input_ids[:, 0, :]
    assert input_ids.ndim == 2, "Expected input shape (B, T)."
    B, T = input_ids.shape
    assert T % SUBSAMPLE == 0
    T_out = T // SUBSAMPLE
    M = B * T_out

    # layout plumbing only: frame + flatten (B, T) -> (B*T_out, SUBSAMPLE);
    # free reshape, NO pad, NO dtype cast (the kernel casts on the VPU and the
    # nonzero count stays exact on the raw dtype).
    xf = input_ids.reshape(M, SUBSAMPLE)

    TR = _choose_tile_rows(M)
    n_tiles = pl.cdiv(M, TR)   # boundary blocks handled by Pallas; no jnp.pad copy

    full = lambda i: (0, 0)
    elem = lambda a: a.size * a.dtype.itemsize
    weight_bytes = sum(elem(params[k]) for k in
                       ("w_in", "b_in", "w1", "b1", "w2", "b2", "w_out", "b_out"))
    flops = 2 * M * (SUBSAMPLE * D_MODEL + D_MODEL * D_FFN
                     + D_FFN * D_MODEL + D_MODEL * SSL_DIM)
    # weights counted ONCE (constant index_map => revisited, not re-fetched)
    bytes_accessed = elem(xf) + weight_bytes + M * SSL_DIM * 2 + M * 4

    hidden_flat, counts = pl.pallas_call(
        _encoder_kernel,
        out_shape=(jax.ShapeDtypeStruct((M, SSL_DIM), jnp.bfloat16),
                   jax.ShapeDtypeStruct((M, 1), jnp.int32)),
        grid_spec=pltpu.PrefetchScalarGridSpec(
            num_scalar_prefetch=0,
            grid=(n_tiles,),
            in_specs=[
                pl.BlockSpec((TR, SUBSAMPLE), lambda i: (i, 0)),
                pl.BlockSpec((SUBSAMPLE, D_MODEL), full),
                pl.BlockSpec((1, D_MODEL), full),
                pl.BlockSpec((D_MODEL, D_FFN), full),
                pl.BlockSpec((1, D_FFN), full),
                pl.BlockSpec((D_FFN, D_MODEL), full),
                pl.BlockSpec((1, D_MODEL), full),
                pl.BlockSpec((D_MODEL, SSL_DIM), full),
                pl.BlockSpec((1, SSL_DIM), full),
            ],
            out_specs=(pl.BlockSpec((TR, SSL_DIM), lambda i: (i, 0)),
                       pl.BlockSpec((TR, 1), lambda i: (i, 0))),
        ),
        compiler_params=pltpu.CompilerParams(
            dimension_semantics=("parallel",),
            vmem_limit_bytes=32 * 1024 * 1024,   # safe on v5e/v6e/v7x
        ),
        cost_estimate=pl.CostEstimate(flops=flops, transcendentals=0,
                                      bytes_accessed=bytes_accessed),
    )(xf, params["w_in"], params["b_in"], params["w1"], params["b1"],
      params["w2"], params["b2"], params["w_out"], params["b_out"])

    # tiny post-processing on (B, T_out)-sized data (glue, negligible traffic)
    audio_len = jnp.sum(counts[:, 0].reshape(B, T_out), axis=1, keepdims=True)   # (B,1)
    out_len = jnp.minimum((audio_len + (SUBSAMPLE - 1)) // SUBSAMPLE, T_out)
    # TODO(synk): torch mask_from_lens uses dynamic max_len = lens.max();
    # static max_len = T_out is used here (dynamic shapes not expressible).
    ids = jnp.arange(T_out, dtype=jnp.int32)[None, :]
    attention_mask = ids < out_len                                                # (B, T_out) bool

    hidden = hidden_flat.reshape(B, T_out, SSL_DIM)
    # Single XLA pass: channels-first transpose fused with the bf16->f32 upcast
    # (review "Option B"); kernel-side write was bf16 so total hidden traffic is
    # bf16-write + bf16-read + f32-write instead of 3x f32.
    last_hidden_state = jnp.transpose(hidden, (0, 2, 1)).astype(jnp.float32)
    return last_hidden_state, attention_mask


# ---------------------------------------------------------------------------
if __name__ == "__main__":
    key = jax.random.PRNGKey(0)
    k_param, k_audio = jax.random.split(key)

    params = init_params(k_param)

    B, T = 2, 1024  # T_out = 8, M = 16 -> 2 grid tiles of 8 rows (megacore path)
    audio = jax.random.normal(k_audio, (B, T), jnp.float32)
    # zero-pad the tail of sample 1 (lengths: [1024, 640])
    lens = jnp.array([T, 640], jnp.int32)
    valid = jnp.arange(T, dtype=jnp.int32)[None, :] < lens[:, None]
    audio = jnp.where(valid, audio, 0.0)
    input_ids = audio[:, None, :]  # (B, 1, T) to exercise the 'b 1 t -> b t' path

    hidden, mask = indic_conformer_feature(input_ids, params)
    jax.block_until_ready((hidden, mask))

    T_out = T // SUBSAMPLE
    assert hidden.shape == (B, SSL_DIM, T_out) and hidden.dtype == jnp.float32
    assert mask.shape == (B, T_out) and mask.dtype == jnp.bool_
    # mask sanity: lengths [1024, 640] -> out_lens [8, 5]
    assert int(mask[0].sum()) == 8 and int(mask[1].sum()) == 5
    print("KERNEL_OK")
</pallas_src>

<mosaic_0001>
module attributes {stable_mosaic.version = 11 : i64} {
  func.func @_encoder_kernel(%arg0: i32, %arg1: memref<8x128xf32, #tpu.memory_space<vmem>>, %arg2: memref<128x128xbf16, #tpu.memory_space<vmem>>, %arg3: memref<1x128xf32, #tpu.memory_space<vmem>>, %arg4: memref<128x256xbf16, #tpu.memory_space<vmem>>, %arg5: memref<1x256xf32, #tpu.memory_space<vmem>>, %arg6: memref<256x128xbf16, #tpu.memory_space<vmem>>, %arg7: memref<1x128xf32, #tpu.memory_space<vmem>>, %arg8: memref<128x128xbf16, #tpu.memory_space<vmem>>, %arg9: memref<1x128xf32, #tpu.memory_space<vmem>>, %arg10: memref<8x128xbf16, #tpu.memory_space<vmem>>, %arg11: memref<8x1xi32, #tpu.memory_space<vmem>>) attributes {dimension_semantics = [#tpu.dimension_semantics<parallel>], iteration_bounds = array<i64: 2>, scalar_prefetch = 0 : i64, scratch_operands = 0 : i64, tpu.core_type = #tpu.core_type<tc>, window_params = [{transform_indices = @transform_0, window_bounds = array<i64: 8, 128>}, {pipeline_mode = #tpu.pipeline_mode<synchronous>, transform_indices = @transform_1, window_bounds = array<i64: 128, 128>}, {pipeline_mode = #tpu.pipeline_mode<synchronous>, transform_indices = @transform_2, window_bounds = array<i64: 1, 128>}, {pipeline_mode = #tpu.pipeline_mode<synchronous>, transform_indices = @transform_3, window_bounds = array<i64: 128, 256>}, {pipeline_mode = #tpu.pipeline_mode<synchronous>, transform_indices = @transform_4, window_bounds = array<i64: 1, 256>}, {pipeline_mode = #tpu.pipeline_mode<synchronous>, transform_indices = @transform_5, window_bounds = array<i64: 256, 128>}, {pipeline_mode = #tpu.pipeline_mode<synchronous>, transform_indices = @transform_6, window_bounds = array<i64: 1, 128>}, {pipeline_mode = #tpu.pipeline_mode<synchronous>, transform_indices = @transform_7, window_bounds = array<i64: 128, 128>}, {pipeline_mode = #tpu.pipeline_mode<synchronous>, transform_indices = @transform_8, window_bounds = array<i64: 1, 128>}, {transform_indices = @transform_9, window_bounds = array<i64: 8, 128>}, {transform_indices = @transform_10, window_bounds = array<i64: 8, 1>}]} {
    %c0 = arith.constant 0 : index
    %c0_0 = arith.constant 0 : index
    %0 = vector.load %arg1[%c0, %c0_0] : memref<8x128xf32, #tpu.memory_space<vmem>>, vector<8x128xf32>
    %cst = arith.constant 0.000000e+00 : f32
    %1 = vector.broadcast %cst : f32 to vector<8x128xf32>
    %2 = arith.cmpf one, %0, %1 : vector<8x128xf32>
    %3 = arith.extui %2 : vector<8x128xi1> to vector<8x128xi32>
    %cst_1 = arith.constant dense<0> : vector<8xi32>
    %4 = vector.multi_reduction <add>, %3, %cst_1 [1] : vector<8x128xi32> to vector<8xi32>
    %5 = vector.shape_cast %4 : vector<8xi32> to vector<8x1xi32>
    %c0_2 = arith.constant 0 : index
    %c0_3 = arith.constant 0 : index
    %6 = vector.load %arg11[%c0_2, %c0_3] : memref<8x1xi32, #tpu.memory_space<vmem>>, vector<8x1xi32>
    tpu.vector_store %arg11[%c0_2, %c0_3], %5 {strides = array<i32>} : memref<8x1xi32, #tpu.memory_space<vmem>>, vector<8x1xi32>,
    %7 = arith.truncf %0 : vector<8x128xf32> to vector<8x128xbf16>
    %c0_4 = arith.constant 0 : index
    %c0_5 = arith.constant 0 : index
    %8 = vector.load %arg2[%c0_4, %c0_5] : memref<128x128xbf16, #tpu.memory_space<vmem>>, vector<128x128xbf16>
    %cst_6 = arith.constant dense<0.000000e+00> : vector<8x128xf32>
    %9 = tpu.matmul %7, %8, %cst_6 {dimension_numbers = #tpu.dot_dimension_numbers<[1], [0], [0], [1], [0, 0, 1, 1], [], []>} : vector<8x128xbf16>, vector<128x128xbf16>, vector<8x128xf32> -> vector<8x128xf32>
    %c0_7 = arith.constant 0 : index
    %c0_8 = arith.constant 0 : index
    %10 = vector.load %arg3[%c0_7, %c0_8] : memref<1x128xf32, #tpu.memory_space<vmem>>, vector<1x128xf32>
    %11 = vector.broadcast %10 : vector<1x128xf32> to vector<8x128xf32>
    %12 = arith.addf %9, %11 : vector<8x128xf32>
    %cst_9 = arith.constant 0.000000e+00 : f32
    %13 = vector.broadcast %cst_9 : f32 to vector<8x128xf32>
    %14 = arith.maximumf %12, %13 : vector<8x128xf32>
    %15 = arith.truncf %14 : vector<8x128xf32> to vector<8x128xbf16>
    %c0_10 = arith.constant 0 : index
    %c0_11 = arith.constant 0 : index
    %16 = vector.load %arg4[%c0_10, %c0_11] : memref<128x256xbf16, #tpu.memory_space<vmem>>, vector<128x256xbf16>
    %cst_12 = arith.constant dense<0.000000e+00> : vector<8x256xf32>
    %17 = tpu.matmul %15, %16, %cst_12 {dimension_numbers = #tpu.dot_dimension_numbers<[1], [0], [0], [1], [0, 0, 1, 1], [], []>} : vector<8x128xbf16>, vector<128x256xbf16>, vector<8x256xf32> -> vector<8x256xf32>
    %c0_13 = arith.constant 0 : index
    %c0_14 = arith.constant 0 : index
    %18 = vector.load %arg5[%c0_13, %c0_14] : memref<1x256xf32, #tpu.memory_space<vmem>>, vector<1x256xf32>
    %19 = vector.broadcast %18 : vector<1x256xf32> to vector<8x256xf32>
    %20 = arith.addf %17, %19 : vector<8x256xf32>
    %cst_15 = arith.constant 0.000000e+00 : f32
    %21 = vector.broadcast %cst_15 : f32 to vector<8x256xf32>
    %22 = arith.maximumf %20, %21 : vector<8x256xf32>
    %23 = arith.truncf %22 : vector<8x256xf32> to vector<8x256xbf16>
    %c0_16 = arith.constant 0 : index
    %c0_17 = arith.constant 0 : index
    %24 = vector.load %arg6[%c0_16, %c0_17] : memref<256x128xbf16, #tpu.memory_space<vmem>>, vector<256x128xbf16>
    %cst_18 = arith.constant dense<0.000000e+00> : vector<8x128xf32>
    %25 = tpu.matmul %23, %24, %cst_18 {dimension_numbers = #tpu.dot_dimension_numbers<[1], [0], [0], [1], [0, 0, 1, 1], [], []>} : vector<8x256xbf16>, vector<256x128xbf16>, vector<8x128xf32> -> vector<8x128xf32>
    %c0_19 = arith.constant 0 : index
    %c0_20 = arith.constant 0 : index
    %26 = vector.load %arg7[%c0_19, %c0_20] : memref<1x128xf32, #tpu.memory_space<vmem>>, vector<1x128xf32>
    %27 = vector.broadcast %26 : vector<1x128xf32> to vector<8x128xf32>
    %28 = arith.addf %25, %27 : vector<8x128xf32>
    %cst_21 = arith.constant 5.000000e-01 : f32
    %29 = vector.broadcast %cst_21 : f32 to vector<8x128xf32>
    %30 = arith.mulf %29, %28 : vector<8x128xf32>
    %31 = arith.addf %14, %30 : vector<8x128xf32>
    %32 = arith.truncf %31 : vector<8x128xf32> to vector<8x128xbf16>
    %c0_22 = arith.constant 0 : index
    %c0_23 = arith.constant 0 : index
    %33 = vector.load %arg8[%c0_22, %c0_23] : memref<128x128xbf16, #tpu.memory_space<vmem>>, vector<128x128xbf16>
    %cst_24 = arith.constant dense<0.000000e+00> : vector<8x128xf32>
    %34 = tpu.matmul %32, %33, %cst_24 {dimension_numbers = #tpu.dot_dimension_numbers<[1], [0], [0], [1], [0, 0, 1, 1], [], []>} : vector<8x128xbf16>, vector<128x128xbf16>, vector<8x128xf32> -> vector<8x128xf32>
    %c0_25 = arith.constant 0 : index
    %c0_26 = arith.constant 0 : index
    %35 = vector.load %arg9[%c0_25, %c0_26] : memref<1x128xf32, #tpu.memory_space<vmem>>, vector<1x128xf32>
    %36 = vector.broadcast %35 : vector<1x128xf32> to vector<8x128xf32>
    %37 = arith.addf %34, %36 : vector<8x128xf32>
    %38 = arith.truncf %37 : vector<8x128xf32> to vector<8x128xbf16>
    %c0_27 = arith.constant 0 : index
    %c0_28 = arith.constant 0 : index
    %39 = vector.load %arg10[%c0_27, %c0_28] : memref<8x128xbf16, #tpu.memory_space<vmem>>, vector<8x128xbf16>
    tpu.vector_store %arg10[%c0_27, %c0_28], %38 {strides = array<i32>} : memref<8x128xbf16, #tpu.memory_space<vmem>>, vector<8x128xbf16>,
    return
  }
  func.func @transform_0(%arg0: i32) -> (i32, i32) {
    %c0_i32 = arith.constant 0 : i32
    %c0_i32_0 = arith.constant 0 : i32
    return %arg0, %c0_i32 : i32, i32
  }
  func.func @transform_1(%arg0: i32) -> (i32, i32) {
    %c0_i32 = arith.constant 0 : i32
    %c0_i32_0 = arith.constant 0 : i32
    %c0_i32_1 = arith.constant 0 : i32
    return %c0_i32, %c0_i32_0 : i32, i32
  }
  func.func @transform_2(%arg0: i32) -> (i32, i32) {
    %c0_i32 = arith.constant 0 : i32
    %c0_i32_0 = arith.constant 0 : i32
    %c0_i32_1 = arith.constant 0 : i32
    return %c0_i32, %c0_i32_0 : i32, i32
  }
  func.func @transform_3(%arg0: i32) -> (i32, i32) {
    %c0_i32 = arith.constant 0 : i32
    %c0_i32_0 = arith.constant 0 : i32
    %c0_i32_1 = arith.constant 0 : i32
    return %c0_i32, %c0_i32_0 : i32, i32
  }
  func.func @transform_4(%arg0: i32) -> (i32, i32) {
    %c0_i32 = arith.constant 0 : i32
    %c0_i32_0 = arith.constant 0 : i32
    %c0_i32_1 = arith.constant 0 : i32
    return %c0_i32, %c0_i32_0 : i32, i32
  }
  func.func @transform_5(%arg0: i32) -> (i32, i32) {
    %c0_i32 = arith.constant 0 : i32
    %c0_i32_0 = arith.constant 0 : i32
    %c0_i32_1 = arith.constant 0 : i32
    return %c0_i32, %c0_i32_0 : i32, i32
  }
  func.func @transform_6(%arg0: i32) -> (i32, i32) {
    %c0_i32 = arith.constant 0 : i32
    %c0_i32_0 = arith.constant 0 : i32
    %c0_i32_1 = arith.constant 0 : i32
    return %c0_i32, %c0_i32_0 : i32, i32
  }
  func.func @transform_7(%arg0: i32) -> (i32, i32) {
    %c0_i32 = arith.constant 0 : i32
    %c0_i32_0 = arith.constant 0 : i32
    %c0_i32_1 = arith.constant 0 : i32
    return %c0_i32, %c0_i32_0 : i32, i32
  }
  func.func @transform_8(%arg0: i32) -> (i32, i32) {
    %c0_i32 = arith.constant 0 : i32
    %c0_i32_0 = arith.constant 0 : i32
    %c0_i32_1 = arith.constant 0 : i32
    return %c0_i32, %c0_i32_0 : i32, i32
  }
  func.func @transform_9(%arg0: i32) -> (i32, i32) {
    %c0_i32 = arith.constant 0 : i32
    %c0_i32_0 = arith.constant 0 : i32
    return %arg0, %c0_i32 : i32, i32
  }
  func.func @transform_10(%arg0: i32) -> (i32, i32) {
    %c0_i32 = arith.constant 0 : i32
    %c0_i32_0 = arith.constant 0 : i32
    return %arg0, %c0_i32 : i32, i32
  }
}

</mosaic_0001>

<llo_original>
// kernel: squeeze.3
$region0: #{squeeze.3}
  %s0 = inlined_call_operand.vmem [shape: s32[16], index: 0, kind: input, shape index: {}]
  %s1 = inlined_call_operand.vmem [shape: s32[2,8], index: 1, kind: output, shape index: {}]
  $region1: #{squeeze.3} parent=0
    #allocation0 [shape = 'u8[4096]{0}', space=vmem, size = 0x1000, scoped, tag = 'scoped mem for output reshape']
    #allocation1 [shape = 'u8[4096]{0}', space=vmem, size = 0x1000, scoped, tag = 'scoped mem for input reshape']
    %s3 = ssub.s32 2, 1
    %v4 = vld [vmem:[%s0] sm:%s3]
    %5 = vst [vmem:[#allocation1] sm:%s3] %v4
    %v6 = vld [vmem:[#allocation1] sm:$0x1]
    %vm7 = vcmask 64512
    %8 = vst.msk [vmem:[#allocation0] sm:$0x1] %vm7, %v6
    %v9 = vld [vmem:[#allocation1] sm:$0x1]
    %10 = vrot.lane.b32.xlu0 %v9, 120
    %v11 = vpop.permute.xlu0 %10
    %vm12 = vcmask 64512
    %s13 = scalar_lea.vmem [#allocation0], 1
    %14 = vst.msk [vmem:[%s13] sm:$0x1] %vm12, %v11
    %s16 = ssub.s32 4, 1
    %v17 = vld [vmem:[#allocation0] sm:%s16]
    %s19 = ssub.s32 4, 1
    %20 = vst [vmem:[%s1] sm:%s19] %v17

// kernel: indic_conformer_feature.1
$region0: #{indic_conformer_feature.1}
  #allocation0 [shape = 'u32[]', space=smem, size = 0x4, offset = 0x4, fixed_abs, tag = 'smem constant byte address 0x4 - core index']
  #allocation1 [shape = 'u32[72,128]{1,0:T(1,128)}', space=vmem, size = 0x9000, scoped, tag = 'internal scratch']
  %s0 = inlined_call_operand.hbm [shape: f32[16,128], index: 0, kind: input, shape index: {}]
  %s1 = inlined_call_operand.hbm [shape: bf16[128,128], index: 1, kind: input, shape index: {}]
  %s2 = inlined_call_operand.vmem [shape: f32[1,128], index: 2, kind: input, shape index: {}]
  %s3 = inlined_call_operand.hbm [shape: bf16[128,256], index: 3, kind: input, shape index: {}]
  %s4 = inlined_call_operand.hbm [shape: f32[1,256], index: 4, kind: input, shape index: {}]
  %s5 = inlined_call_operand.hbm [shape: bf16[256,128], index: 5, kind: input, shape index: {}]
  %s6 = inlined_call_operand.vmem [shape: f32[1,128], index: 6, kind: input, shape index: {}]
  %s7 = inlined_call_operand.hbm [shape: bf16[128,128], index: 7, kind: input, shape index: {}]
  %s8 = inlined_call_operand.vmem [shape: f32[1,128], index: 8, kind: input, shape index: {}]
  %s9 = inlined_call_operand.vmem [shape: bf16[16,128], index: 9, kind: output, shape index: {0}]
  %s10 = inlined_call_operand.vmem [shape: s32[16,1], index: 10, kind: output, shape index: {1}]
  %11 = xla_tuple %s9, %s10
  %s12 = sld [smem:[#allocation0]]
  $region101: #{indic_conformer_feature.1} parent=0
    _
  %s14 = ssub.s32 1, %s12
  %s15 = scalar_select 0, %s14, %s12
  $region1: #{indic_conformer_feature.1} parent=0
    #allocation2 [shape = 'u8[8192]{0}', space=vmem, size = 0x2000, scoped, tag = 'input window, operand 0']
    #allocation3 [shape = 's32[2]{0}', space=sflag, size = 0x8, scoped, tag = 'scoped memory for indic_conformer_feature.1']
    #allocation4 [shape = 'u8[32768]{0}', space=vmem, size = 0x8000, scoped, tag = 'input window, operand 1, single buffered']
    #allocation5 [shape = 's32[1]{0}', space=sflag, size = 0x4, scoped, tag = 'scoped memory for indic_conformer_feature.1']
    #allocation6 [shape = 'u8[65536]{0}', space=vmem, size = 0x10000, scoped, tag = 'input window, operand 3, single buffered']
    #allocation7 [shape = 'u8[1024]{0}', space=vmem, size = 0x400, scoped, tag = 'input window, operand 4, single buffered']
    #allocation8 [shape = 's32[1]{0}', space=sflag, size = 0x4, scoped, tag = 'scoped memory for indic_conformer_feature.1']
    #allocation9 [shape = 'u8[65536]{0}', space=vmem, size = 0x10000, scoped, tag = 'input window, operand 5, single buffered']
    #allocation10 [shape = 'u8[32768]{0}', space=vmem, size = 0x8000, scoped, tag = 'input window, operand 7, single buffered']
    #allocation11 [shape = 's32[1]{0}', space=sflag, size = 0x4, scoped, tag = 'scoped memory for indic_conformer_feature.1']
    %16 = vsyncpa [#allocation3], 0
    %s17 = scalar_lea.sflag [#allocation3], 1
    %18 = vsyncpa %s17, 0
    %19 = vsyncpa [#allocation5], 0
    %20 = vsyncpa [#allocation8], 0
    %21 = vsyncpa [#allocation11], 0
    loop: start=0, step=1, limit=4
    $region2: #{indic_conformer_feature.1} parent=1 // loop_pre_header
      _
    $region3: #{indic_conformer_feature.1} parent=1 // loop_header
      %s23 = sphi 0, %s27
      %p24 = scmp.ge.s32.totalorder %s23, 4
      %s33 = sphi 0, %s35
      %s36 = sphi 0, %s33
      %s37 = sphi 0, %s36
      %s53 = sphi 0, %s37
      %s57 = sphi 0, %s57
      %s59 = sphi 0, %s57
      %s60 = sphi 0, %s59
      %s74 = sphi 0, %s60
      %s78 = sphi 0, %s78
      %s80 = sphi 0, %s78
      %s81 = sphi 0, %s80
      %s95 = sphi 0, %s81
      %s99 = sphi 0, %s99
      %s101 = sphi 0, %s99
      %s102 = sphi 0, %s101
      %s116 = sphi 0, %s102
      %s120 = sphi 0, %s120
      %s122 = sphi 0, %s120
      %s123 = sphi 0, %s122
      %s137 = sphi 0, %s123
      %s141 = sphi 0, %s141
      %s143 = sphi 0, %s141
      %s144 = sphi 0, %s143
      %s158 = sphi 0, %s144
      %s162 = sphi 0, %s162
      %s164 = sphi 0, %s162
      %s165 = sphi 0, %s164
      %s179 = sphi 0, %s165
      %s183 = sphi 0, %s183
      %s185 = sphi 0, %s183
      %s186 = sphi 0, %s185
      %s200 = sphi 0, %s186
      %s204 = sphi 0, %s204
      %s206 = sphi 0, %s204
      %s207 = sphi 0, %s206
      %s221 = sphi 0, %s207
      %s227 = sphi 0, %s229
      %s230 = sphi 0, %s227
      %s231 = sphi 0, %s230
      %s247 = sphi 0, %s231
      %s253 = sphi 0, %s255
      %s256 = sphi 0, %s253
      %s257 = sphi 0, %s256
      %s273 = sphi 0, %s257
    $region4: #{indic_conformer_feature.1} parent=1 // loop_header_branch
      %26 = sbr.rel (%p24) target = $region8
    $region5: #{indic_conformer_feature.1} parent=1 // loop_body
      %s28 = ssub.s32 %s23, 1
      %s29 = ssub.s32 %s23, 2
      %s30 = sadd.s32 %s23, 1
      %s31 = ssub.s32 %s23, %s30
      %p32 = scmp.eq.s32.totalorder %s31, 0
      %s34 = sadd.s32 %s33, 1
      %s35 = scalar_select %p32, %s33, %s34
      %p38 = pneg %p32
      %p39 = scmp.eq.s32.totalorder %s23, 1
      %p40 = por %p38, %p39
      %p41 = scmp.ne.s32.totalorder %s33, %s36
      %p42 = scmp.eq.s32.totalorder %s23, 0
      %p43 = por %p41, %p42
      %p44 = scmp.ne.s32.totalorder %s33, %s36
      %p45 = scmp.eq.s32.totalorder %s28, 1
      %p46 = por %p44, %p45
      %p47 = scmp.ne.s32.totalorder %s36, %s37
      %p48 = scmp.eq.s32.totalorder %s28, 0
      %p49 = por %p47, %p48
      %p50 = scmp.ne.s32.totalorder %s36, %s37
      %p51 = scmp.eq.s32.totalorder %s29, 1
      %p52 = por %p50, %p51
      %p54 = scmp.ne.s32.totalorder %s37, %s53
      %p55 = scmp.eq.s32.totalorder %s29, 0
      %p56 = por %p54, %p55
      %s58 = sadd.s32 %s57, 1
      %p61 = scmp.eq.s32.totalorder %s23, 1
      %p62 = scmp.ne.s32.totalorder %s57, %s59
      %p63 = scmp.eq.s32.totalorder %s23, 0
      %p64 = por %p62, %p63
      %p65 = scmp.ne.s32.totalorder %s57, %s59
      %p66 = scmp.eq.s32.totalorder %s28, 1
      %p67 = por %p65, %p66
      %p68 = scmp.ne.s32.totalorder %s59, %s60
      %p69 = scmp.eq.s32.totalorder %s28, 0
      %p70 = por %p68, %p69
      %p71 = scmp.ne.s32.totalorder %s59, %s60
      %p72 = scmp.eq.s32.totalorder %s29, 1
      %p73 = por %p71, %p72
      %p75 = scmp.ne.s32.totalorder %s60, %s74
      %p76 = scmp.eq.s32.totalorder %s29, 0
      %p77 = por %p75, %p76
      %s79 = sadd.s32 %s78, 1
      %p82 = scmp.eq.s32.totalorder %s23, 1
      %p83 = scmp.ne.s32.totalorder %s78, %s80
      %p84 = scmp.eq.s32.totalorder %s23, 0
      %p85 = por %p83, %p84
      %p86 = scmp.ne.s32.totalorder %s78, %s80
      %p87 = scmp.eq.s32.totalorder %s28, 1
      %p88 = por %p86, %p87
      %p89 = scmp.ne.s32.totalorder %s80, %s81
      %p90 = scmp.eq.s32.totalorder %s28, 0
      %p91 = por %p89, %p90
      %p92 = scmp.ne.s32.totalorder %s80, %s81
      %p93 = scmp.eq.s32.totalorder %s29, 1
      %p94 = por %p92, %p93
      %p96 = scmp.ne.s32.totalorder %s81, %s95
      %p97 = scmp.eq.s32.totalorder %s29, 0
      %p98 = por %p96, %p97
      %s100 = sadd.s32 %s99, 1
      %p103 = scmp.eq.s32.totalorder %s23, 1
      %p104 = scmp.ne.s32.totalorder %s99, %s101
      %p105 = scmp.eq.s32.totalorder %s23, 0
      %p106 = por %p104, %p105
      %p107 = scmp.ne.s32.totalorder %s99, %s101
      %p108 = scmp.eq.s32.totalorder %s28, 1
      %p109 = por %p107, %p108
      %p110 = scmp.ne.s32.totalorder %s101, %s102
      %p111 = scmp.eq.s32.totalorder %s28, 0
      %p112 = por %p110, %p111
      %p113 = scmp.ne.s32.totalorder %s101, %s102
      %p114 = scmp.eq.s32.totalorder %s29, 1
      %p115 = por %p113, %p114
      %p117 = scmp.ne.s32.totalorder %s102, %s116
      %p118 = scmp.eq.s32.totalorder %s29, 0
      %p119 = por %p117, %p118
      %s121 = sadd.s32 %s120, 1
      %p124 = scmp.eq.s32.totalorder %s23, 1
      %p125 = scmp.ne.s32.totalorder %s120, %s122
      %p126 = scmp.eq.s32.totalorder %s23, 0
      %p127 = por %p125, %p126
      %p128 = scmp.ne.s32.totalorder %s120, %s122
      %p129 = scmp.eq.s32.totalorder %s28, 1
      %p130 = por %p128, %p129
      %p131 = scmp.ne.s32.totalorder %s122, %s123
      %p132 = scmp.eq.s32.totalorder %s28, 0
      %p133 = por %p131, %p132
      %p134 = scmp.ne.s32.totalorder %s122, %s123
      %p135 = scmp.eq.s32.totalorder %s29, 1
      %p136 = por %p134, %p135
      %p138 = scmp.ne.s32.totalorder %s123, %s137
      %p139 = scmp.eq.s32.totalorder %s29, 0
      %p140 = por %p138, %p139
      %s142 = sadd.s32 %s141, 1
      %p145 = scmp.eq.s32.totalorder %s23, 1
      %p146 = scmp.ne.s32.totalorder %s141, %s143
      %p147 = scmp.eq.s32.totalorder %s23, 0
      %p148 = por %p146, %p147
      %p149 = scmp.ne.s32.totalorder %s141, %s143
      %p150 = scmp.eq.s32.totalorder %s28, 1
      %p151 = por %p149, %p150
      %p152 = scmp.ne.s32.totalorder %s143, %s144
      %p153 = scmp.eq.s32.totalorder %s28, 0
      %p154 = por %p152, %p153
      %p155 = scmp.ne.s32.totalorder %s143, %s144
      %p156 = scmp.eq.s32.totalorder %s29, 1
      %p157 = por %p155, %p156
      %p159 = scmp.ne.s32.totalorder %s144, %s158
      %p160 = scmp.eq.s32.totalorder %s29, 0
      %p161 = por %p159, %p160
      %s163 = sadd.s32 %s162, 1
      %p166 = scmp.eq.s32.totalorder %s23, 1
      %p167 = scmp.ne.s32.totalorder %s162, %s164
      %p168 = scmp.eq.s32.totalorder %s23, 0
      %p169 = por %p167, %p168
      %p170 = scmp.ne.s32.totalorder %s162, %s164
      %p171 = scmp.eq.s32.totalorder %s28, 1
      %p172 = por %p170, %p171
      %p173 = scmp.ne.s32.totalorder %s164, %s165
      %p174 = scmp.eq.s32.totalorder %s28, 0
      %p175 = por %p173, %p174
      %p176 = scmp.ne.s32.totalorder %s164, %s165
      %p177 = scmp.eq.s32.totalorder %s29, 1
      %p178 = por %p176, %p177
      %p180 = scmp.ne.s32.totalorder %s165, %s179
      %p181 = scmp.eq.s32.totalorder %s29, 0
      %p182 = por %p180, %p181
      %s184 = sadd.s32 %s183, 1
      %p187 = scmp.eq.s32.totalorder %s23, 1
      %p188 = scmp.ne.s32.totalorder %s183, %s185
      %p189 = scmp.eq.s32.totalorder %s23, 0
      %p190 = por %p188, %p189
      %p191 = scmp.ne.s32.totalorder %s183, %s185
      %p192 = scmp.eq.s32.totalorder %s28, 1
      %p193 = por %p191, %p192
      %p194 = scmp.ne.s32.totalorder %s185, %s186
      %p195 = scmp.eq.s32.totalorder %s28, 0
      %p196 = por %p194, %p195
      %p197 = scmp.ne.s32.totalorder %s185, %s186
      %p198 = scmp.eq.s32.totalorder %s29, 1
      %p199 = por %p197, %p198
      %p201 = scmp.ne.s32.totalorder %s186, %s200
      %p202 = scmp.eq.s32.totalorder %s29, 0
      %p203 = por %p201, %p202
      %s205 = sadd.s32 %s204, 1
      %p208 = scmp.eq.s32.totalorder %s23, 1
      %p209 = scmp.ne.s32.totalorder %s204, %s206
      %p210 = scmp.eq.s32.totalorder %s23, 0
      %p211 = por %p209, %p210
      %p212 = scmp.ne.s32.totalorder %s204, %s206
      %p213 = scmp.eq.s32.totalorder %s28, 1
      %p214 = por %p212, %p213
      %p215 = scmp.ne.s32.totalorder %s206, %s207
      %p216 = scmp.eq.s32.totalorder %s28, 0
      %p217 = por %p215, %p216
      %p218 = scmp.ne.s32.totalorder %s206, %s207
      %p219 = scmp.eq.s32.totalorder %s29, 1
      %p220 = por %p218, %p219
      %p222 = scmp.ne.s32.totalorder %s207, %s221
      %p223 = scmp.eq.s32.totalorder %s29, 0
      %p224 = por %p222, %p223
      %s225 = ssub.s32 %s23, %s30
      %p226 = scmp.eq.s32.totalorder %s225, 0
      %s228 = sadd.s32 %s227, 1
      %s229 = scalar_select %p226, %s227, %s228
      %p232 = pneg %p226
      %p233 = scmp.eq.s32.totalorder %s23, 1
      %p234 = por %p232, %p233
      %p235 = scmp.ne.s32.totalorder %s227, %s230
      %p236 = scmp.eq.s32.totalorder %s23, 0
      %p237 = por %p235, %p236
      %p238 = scmp.ne.s32.totalorder %s227, %s230
      %p239 = scmp.eq.s32.totalorder %s28, 1
      %p240 = por %p238, %p239
      %p241 = scmp.ne.s32.totalorder %s230, %s231
      %p242 = scmp.eq.s32.totalorder %s28, 0
      %p243 = por %p241, %p242
      %p244 = scmp.ne.s32.totalorder %s230, %s231
      %p245 = scmp.eq.s32.totalorder %s29, 1
      %p246 = por %p244, %p245
      %p248 = scmp.ne.s32.totalorder %s231, %s247
      %p249 = scmp.eq.s32.totalorder %s29, 0
      %p250 = por %p248, %p249
      %s251 = ssub.s32 %s23, %s30
      %p252 = scmp.eq.s32.totalorder %s251, 0
      %s254 = sadd.s32 %s253, 1
      %s255 = scalar_select %p252, %s253, %s254
      %p258 = pneg %p252
      %p259 = scmp.eq.s32.totalorder %s23, 1
      %p260 = por %p258, %p259
      %p261 = scmp.ne.s32.totalorder %s253, %s256
      %p262 = scmp.eq.s32.totalorder %s23, 0
      %p263 = por %p261, %p262
      %p264 = scmp.ne.s32.totalorder %s253, %s256
      %p265 = scmp.eq.s32.totalorder %s28, 1
      %p266 = por %p264, %p265
      %p267 = scmp.ne.s32.totalorder %s256, %s257
      %p268 = scmp.eq.s32.totalorder %s28, 0
      %p269 = por %p267, %p268
      %p270 = scmp.ne.s32.totalorder %s256, %s257
      %p271 = scmp.eq.s32.totalorder %s29, 1
      %p272 = por %p270, %p271
      %p274 = scmp.ne.s32.totalorder %s257, %s273
      %p275 = scmp.eq.s32.totalorder %s29, 0
      %p276 = por %p274, %p275
      %p277 = scmp.le.s32.totalorder 1, %s23
      %p278 = scmp.lt.s32.totalorder %s23, 3
      %p279 = pnand %p277, %p278
      %p280 = pneg %p279
      // Predicated region
      $region9: #{indic_conformer_feature.1} parent=5 // pred_check
        _
      $region10: #{indic_conformer_feature.1} parent=5 // pred_check_branch
        %282 = sbr.rel (%p279) target = $region12
      $region11: #{indic_conformer_feature.1} parent=5 // pred_region
        %s283 = ssub.s32 %s23, 1
        // Predicated region
        $region13: #{indic_conformer_feature.1} parent=11 // pred_check
          %p284 = pneg %p70
        $region14: #{indic_conformer_feature.1} parent=11 // pred_check_branch
          %286 = sbr.rel (%p284) target = $region16
        $region15: #{indic_conformer_feature.1} parent=11 // pred_region
          %288 = vsyncadd [#allocation5], 0
          %s289 = sshll.u32 %s1, 4
          %s290 = int_to_ptr.hbm [resolvable:$true] %s289
          %s291 = sshll.u32 [#allocation4], 4
          %s292 = int_to_ptr.vmem [resolvable:$true] %s291
          %297 = dma.hbm_to_vmem [thread:$0]  %s290, 1024, %s292, [#allocation5], 64, 64, 4
        $region16: #{indic_conformer_feature.1} parent=11 // pred_fallthru
          _
        // Predicated region
        $region17: #{indic_conformer_feature.1} parent=11 // pred_check
          %p298 = pneg %p91
        $region18: #{indic_conformer_feature.1} parent=11 // pred_check_branch
          %300 = sbr.rel (%p298) target = $region20
        $region19: #{indic_conformer_feature.1} parent=11 // pred_region
          _
        $region20: #{indic_conformer_feature.1} parent=11 // pred_fallthru
          _
        // Predicated region
        $region21: #{indic_conformer_feature.1} parent=11 // pred_check
          %p301 = pneg %p112
        $region22: #{indic_conformer_feature.1} parent=11 // pred_check_branch
          %303 = sbr.rel (%p301) target = $region24
        $region23: #{indic_conformer_feature.1} parent=11 // pred_region
          %305 = vsyncadd [#allocation5], 0
          %s306 = sshll.u32 %s3, 4
          %s307 = int_to_ptr.hbm [resolvable:$true] %s306
          %s308 = sshll.u32 [#allocation6], 4
          %s309 = int_to_ptr.vmem [resolvable:$true] %s308
          %314 = dma.hbm_to_vmem [thread:$0]  %s307, 2048, %s309, [#allocation5], 128, 128, 8
        $region24: #{indic_conformer_feature.1} parent=11 // pred_fallthru
          _
        // Predicated region
        $region25: #{indic_conformer_feature.1} parent=11 // pred_check
          %p315 = pneg %p133
        $region26: #{indic_conformer_feature.1} parent=11 // pred_check_branch
          %317 = sbr.rel (%p315) target = $region28
        $region27: #{indic_conformer_feature.1} parent=11 // pred_region
          %319 = vsyncadd [#allocation8], 0
          %s321 = sshll.u32 %s4, 4
          %s322 = int_to_ptr.hbm [resolvable:$true] %s321
          %s323 = sshll.u32 [#allocation7], 4
          %s324 = int_to_ptr.vmem [resolvable:$true] %s323
          %326 = dma.hbm_to_vmem [thread:$0]  %s322, 32, %s324, [#allocation8]
        $region28: #{indic_conformer_feature.1} parent=11 // pred_fallthru
          _
        // Predicated region
        $region29: #{indic_conformer_feature.1} parent=11 // pred_check
          %p327 = pneg %p154
        $region30: #{indic_conformer_feature.1} parent=11 // pred_check_branch
          %329 = sbr.rel (%p327) target = $region32
        $region31: #{indic_conformer_feature.1} parent=11 // pred_region
          %331 = vsyncadd [#allocation8], 0
          %s332 = sshll.u32 %s5, 4
          %s333 = int_to_ptr.hbm [resolvable:$true] %s332
          %s334 = sshll.u32 [#allocation9], 4
          %s335 = int_to_ptr.vmem [resolvable:$true] %s334
          %340 = dma.hbm_to_vmem [thread:$0]  %s333, 2048, %s335, [#allocation8], 64, 64, 4
        $region32: #{indic_conformer_feature.1} parent=11 // pred_fallthru
          _
        // Predicated region
        $region33: #{indic_conformer_feature.1} parent=11 // pred_check
          %p341 = pneg %p175
        $region34: #{indic_conformer_feature.1} parent=11 // pred_check_branch
          %343 = sbr.rel (%p341) target = $region36
        $region35: #{indic_conformer_feature.1} parent=11 // pred_region
          _
        $region36: #{indic_conformer_feature.1} parent=11 // pred_fallthru
          _
        // Predicated region
        $region37: #{indic_conformer_feature.1} parent=11 // pred_check
          %p344 = pneg %p196
        $region38: #{indic_conformer_feature.1} parent=11 // pred_check_branch
          %346 = sbr.rel (%p344) target = $region40
        $region39: #{indic_conformer_feature.1} parent=11 // pred_region
          %348 = vsyncadd [#allocation11], 0
          %s349 = sshll.u32 %s7, 4
          %s350 = int_to_ptr.hbm [resolvable:$true] %s349
          %s351 = sshll.u32 [#allocation10], 4
          %s352 = int_to_ptr.vmem [resolvable:$true] %s351
          %357 = dma.hbm_to_vmem [thread:$0]  %s350, 1024, %s352, [#allocation11], 64, 64, 4
        $region40: #{indic_conformer_feature.1} parent=11 // pred_fallthru
          _
        // Predicated region
        $region41: #{indic_conformer_feature.1} parent=11 // pred_check
          %p358 = pneg %p217
        $region42: #{indic_conformer_feature.1} parent=11 // pred_check_branch
          %360 = sbr.rel (%p358) target = $region44
        $region43: #{indic_conformer_feature.1} parent=11 // pred_region
          _
        $region44: #{indic_conformer_feature.1} parent=11 // pred_fallthru
          _
      $region12: #{indic_conformer_feature.1} parent=5 // pred_fallthru
        _
      %p361 = scmp.lt.s32.totalorder %s23, 2
      // Predicated region
      $region45: #{indic_conformer_feature.1} parent=5 // pred_check
        %p362 = pneg %p361
      $region46: #{indic_conformer_feature.1} parent=5 // pred_check_branch
        %364 = sbr.rel (%p362) target = $region48
      $region47: #{indic_conformer_feature.1} parent=5 // pred_region
        // Predicated region
        $region49: #{indic_conformer_feature.1} parent=47 // pred_check
          %p365 = pneg %p43
        $region50: #{indic_conformer_feature.1} parent=47 // pred_check_branch
          %367 = sbr.rel (%p365) target = $region52
        $region51: #{indic_conformer_feature.1} parent=47 // pred_region
          %s368 = sand.u32 %s33, 1
          %s369 = scalar_lea.sflag [#allocation3], %s368
          %s370 = sand.u32 %s33, 1
          %s371 = smul.addr %s370, 8
          %s372 = scalar_lea.vmem [#allocation2], %s371
          %374 = vsyncadd %s369, 0
          %s375 = smul.addr %s23, 8
          %s376 = scalar_lea.hbm %s0, %s375
          %s378 = sshll.u32 %s376, 4
          %s379 = int_to_ptr.hbm [resolvable:$true] %s378
          %s380 = sshll.u32 %s372, 4
          %s381 = int_to_ptr.vmem [resolvable:$true] %s380
          %383 = dma.hbm_to_vmem [thread:$0]  %s379, 128, %s381, %s369
        $region52: #{indic_conformer_feature.1} parent=47 // pred_fallthru
          _
      $region48: #{indic_conformer_feature.1} parent=5 // pred_fallthru
        _
      %p384 = scmp.le.s32.totalorder 1, %s23
      %p385 = scmp.lt.s32.totalorder %s23, 3
      %p386 = pnand %p384, %p385
      %p387 = pneg %p386
      // Predicated region
      $region53: #{indic_conformer_feature.1} parent=5 // pred_check
        _
      $region54: #{indic_conformer_feature.1} parent=5 // pred_check_branch
        %389 = sbr.rel (%p386) target = $region56
      $region55: #{indic_conformer_feature.1} parent=5 // pred_region
        %s390 = ssub.s32 %s23, 1
        %s391 = sand.u32 %s36, 1
        %s392 = scalar_lea.sflag [#allocation3], %s391
        %s393 = sand.u32 %s36, 1
        %s394 = smul.addr %s393, 8
        %s395 = scalar_lea.vmem [#allocation2], %s394
        // Predicated region
        $region57: #{indic_conformer_feature.1} parent=55 // pred_check
          %p396 = pneg %p49
        $region58: #{indic_conformer_feature.1} parent=55 // pred_check_branch
          %398 = sbr.rel (%p396) target = $region60
        $region59: #{indic_conformer_feature.1} parent=55 // pred_region
          %400 = dma.done %s392, 128
        $region60: #{indic_conformer_feature.1} parent=55 // pred_fallthru
          _
        // Predicated region
        $region61: #{indic_conformer_feature.1} parent=55 // pred_check
          %p401 = pneg %p70
        $region62: #{indic_conformer_feature.1} parent=55 // pred_check_branch
          %403 = sbr.rel (%p401) target = $region64
        $region63: #{indic_conformer_feature.1} parent=55 // pred_region
          %405 = dma.done [#allocation5], 1024
        $region64: #{indic_conformer_feature.1} parent=55 // pred_fallthru
          _
        // Predicated region
        $region65: #{indic_conformer_feature.1} parent=55 // pred_check
          %p406 = pneg %p112
        $region66: #{indic_conformer_feature.1} parent=55 // pred_check_branch
          %408 = sbr.rel (%p406) target = $region68
        $region67: #{indic_conformer_feature.1} parent=55 // pred_region
          %410 = dma.done [#allocation5], 2048
        $region68: #{indic_conformer_feature.1} parent=55 // pred_fallthru
          _
        // Predicated region
        $region69: #{indic_conformer_feature.1} parent=55 // pred_check
          %p411 = pneg %p133
        $region70: #{indic_conformer_feature.1} parent=55 // pred_check_branch
          %413 = sbr.rel (%p411) target = $region72
        $region71: #{indic_conformer_feature.1} parent=55 // pred_region
          %415 = dma.done [#allocation8], 32
        $region72: #{indic_conformer_feature.1} parent=55 // pred_fallthru
          _
        // Predicated region
        $region73: #{indic_conformer_feature.1} parent=55 // pred_check
          %p416 = pneg %p154
        $region74: #{indic_conformer_feature.1} parent=55 // pred_check_branch
          %418 = sbr.rel (%p416) target = $region76
        $region75: #{indic_conformer_feature.1} parent=55 // pred_region
          %420 = dma.done [#allocation8], 2048
        $region76: #{indic_conformer_feature.1} parent=55 // pred_fallthru
          _
        // Predicated region
        $region77: #{indic_conformer_feature.1} parent=55 // pred_check
          %p421 = pneg %p196
        $region78: #{indic_conformer_feature.1} parent=55 // pred_check_branch
          %423 = sbr.rel (%p421) target = $region80
        $region79: #{indic_conformer_feature.1} parent=55 // pred_region
          %425 = dma.done [#allocation11], 1024
        $region80: #{indic_conformer_feature.1} parent=55 // pred_fallthru
          _
        %s426 = sand.u32 %s36, 1
        %s427 = scalar_lea.sflag [#allocation3], %s426
        %s428 = sand.u32 %s36, 1
        %s429 = smul.addr %s428, 8
        %s430 = scalar_lea.vmem [#allocation2], %s429
        %p431 = pneg %p49
        %p432 = pneg %p46
        %p433 = pneg %p70
        %p434 = pneg %p67
        %p435 = pneg %p91
        %p436 = pneg %p88
        %p437 = pneg %p112
        %p438 = pneg %p109
        %p439 = pneg %p133
        %p440 = pneg %p130
        %p441 = pneg %p154
        %p442 = pneg %p151
        %p443 = pneg %p175
        %p444 = pneg %p172
        %p445 = pneg %p196
        %p446 = pneg %p193
        %p447 = pneg %p217
        %p448 = pneg %p214
        %p449 = pneg %p243
        %p450 = pneg %p240
        %p451 = scmp.lt.s32.totalorder %s28, 1
        %s452 = scalar_select %p451, %s28, 1
        %s453 = smul.addr %s452, 4
        %s454 = scalar_lea.vmem %s9, %s453
        %p455 = pneg %p269
        %p456 = pneg %p266
        %p457 = scmp.lt.s32.totalorder %s28, 1
        %s458 = scalar_select %p457, %s28, 1
        %s459 = smul.addr %s458, 8
        %s460 = scalar_lea.vmem %s10, %s459
        %p461 = scmp.lt.s32.totalorder %s28, 1
        %s462 = scalar_select %p461, %s28, 1
        %s463 = smul.addr %s462, 4
        %s464 = scalar_lea.vmem %s9, %s463
        %p465 = scmp.lt.s32.totalorder %s28, 1
        %s466 = scalar_select %p465, %s28, 1
        %s467 = smul.addr %s466, 8
        %s468 = scalar_lea.vmem %s10, %s467
        %v469 = vld [vmem:[%s395] sm:$0xff]
        %vm470 = vcmp.ne.f32.partialorder %v469, 0.0
        %v471 = vsel %vm470, 1, 0
        %v472 = vand.u32 %v471, 65535
        %v473 = vshrl.u32 %v471, 16
        %v474 = vcvt.s32.f32 %v472
        %v475 = vcvt.s32.f32 %v473
        %476 = vadd.xlane.f32.xlu0 %v474
        %v477 = vpop.xlane.xlu0 %476
        %478 = vadd.xlane.f32.xlu0 %v475
        %v479 = vpop.xlane.xlu0 %478
        %v480 = vcvt.f32.s32 %v477
        %v481 = vcvt.f32.s32 %v479
        %v482 = vshll.u32 %v481, 16
        %v483 = vadd.s32 %v482, %v480
        %vm484 = vcmask 7168
        %485 = vst.msk [vmem:[%s468] sm:$0xff] %vm484, %v483
        %v486 = vpack.c.bf16 %v469, %v469
        %v487 = vld [vmem:[#allocation4] sm:$0xf]
        %v488 = vld [vmem:[#allocation4 + $0x4] sm:$0xf]
        %v489 = vld [vmem:[#allocation4 + $0x8] sm:$0xf]
        %v490 = vld [vmem:[#allocation4 + $0xc] sm:$0xf]
        %v491 = vld [vmem:[#allocation4 + $0x10] sm:$0xf]
        %v492 = vld [vmem:[#allocation4 + $0x14] sm:$0xf]
        %v493 = vld [vmem:[#allocation4 + $0x18] sm:$0xf]
        %v494 = vld [vmem:[#allocation4 + $0x1c] sm:$0xf]
        %v495 = vld [vmem:[#allocation4 + $0x20] sm:$0xf]
        %v496 = vld [vmem:[#allocation4 + $0x24] sm:$0xf]
        %v497 = vld [vmem:[#allocation4 + $0x28] sm:$0xf]
        %v498 = vld [vmem:[#allocation4 + $0x2c] sm:$0xf]
        %v499 = vld [vmem:[#allocation4 + $0x30] sm:$0xf]
        %v500 = vld [vmem:[#allocation4 + $0x34] sm:$0xf]
        %v501 = vld [vmem:[#allocation4 + $0x38] sm:$0xf]
        %v502 = vld [vmem:[#allocation4 + $0x3c] sm:$0xf]
        %v503 = vld [vmem:[%s2] sm:$0x1]
        %v505 = vperm.slane %v503, 0
        %v523 = vunpack.c.l.b16 %v487
        %v524 = vunpack.c.l.b16 %v488
        %v525 = vunpack.c.l.b16 %v489
        %v526 = vunpack.c.l.b16 %v490
        %v527 = vunpack.c.l.b16 %v491
        %v528 = vunpack.c.l.b16 %v492
        %v529 = vunpack.c.l.b16 %v493
        %v530 = vunpack.c.l.b16 %v494
        %v531 = vunpack.c.l.b16 %v495
        %v532 = vunpack.c.l.b16 %v496
        %v533 = vunpack.c.l.b16 %v497
        %v534 = vunpack.c.l.b16 %v498
        %v535 = vunpack.c.l.b16 %v499
        %v536 = vunpack.c.l.b16 %v500
        %v537 = vunpack.c.l.b16 %v501
        %v538 = vunpack.c.l.b16 %v502
        %v539 = vpack.c.b16 %v524, %v523
        %v540 = vpack.c.b16 %v526, %v525
        %v541 = vpack.c.b16 %v528, %v527
        %v542 = vpack.c.b16 %v530, %v529
        %v543 = vpack.c.b16 %v532, %v531
        %v544 = vpack.c.b16 %v534, %v533
        %v545 = vpack.c.b16 %v536, %v535
        %v546 = vpack.c.b16 %v538, %v537
        %555 = vmatpush.bf16.msra.mxu0 %v546
        %556 = vmatpush.bf16.msra.mxu0 %v545
        %557 = vmatpush.bf16.msra.mxu0 %v544
        %558 = vmatpush.bf16.msra.mxu0 %v543
        %559 = vmatpush.bf16.msra.mxu0 %v542
        %560 = vmatpush.bf16.msra.mxu0 %v541
        %561 = vmatpush.bf16.msra.mxu0 %v540
        %562 = vmatpush.bf16.msra.mxu0 %v539
        %563 = vmatmul.bf16.gmra.mxu0 %v486
        %v564 = vpop.f32.mrf.mxu0
        %v565 = vadd.f32 %v505, %v564
        %v566 = vpop.f32.mrf.mxu0
        %567 = vdwg.mxu0
        %v568 = vmax.f32 %v565, 0.0
        %v569 = vpack.c.bf16 %v568, %v568
        %v570 = vld [vmem:[#allocation6] sm:$0xff]
        %v571 = vld [vmem:[#allocation6 + $0x8] sm:$0xff]
        %v572 = vld [vmem:[#allocation6 + $0x10] sm:$0xff]
        %v573 = vld [vmem:[#allocation6 + $0x18] sm:$0xff]
        %v574 = vld [vmem:[#allocation6 + $0x20] sm:$0xff]
        %v575 = vld [vmem:[#allocation6 + $0x28] sm:$0xff]
        %v576 = vld [vmem:[#allocation6 + $0x30] sm:$0xff]
        %v577 = vld [vmem:[#allocation6 + $0x38] sm:$0xff]
        %v578 = vld [vmem:[#allocation6 + $0x40] sm:$0xff]
        %v579 = vld [vmem:[#allocation6 + $0x48] sm:$0xff]
        %v580 = vld [vmem:[#allocation6 + $0x50] sm:$0xff]
        %v581 = vld [vmem:[#allocation6 + $0x58] sm:$0xff]
        %v582 = vld [vmem:[#allocation6 + $0x60] sm:$0xff]
        %v583 = vld [vmem:[#allocation6 + $0x68] sm:$0xff]
        %v584 = vld [vmem:[#allocation6 + $0x70] sm:$0xff]
        %v585 = vld [vmem:[#allocation6 + $0x78] sm:$0xff]
        %v586 = vld [vmem:[#allocation7] sm:$0x3]
        %v588 = vperm.slane %v586, 0
        %v589 = vperm.slane %v586, 1
        %v608 = vunpack.c.l.b16 %v570
        %v609 = vunpack.c.h.b16 %v570
        %v610 = vunpack.c.l.b16 %v571
        %v611 = vunpack.c.h.b16 %v571
        %v612 = vunpack.c.l.b16 %v572
        %v613 = vunpack.c.h.b16 %v572
        %v614 = vunpack.c.l.b16 %v573
        %v615 = vunpack.c.h.b16 %v573
        %v616 = vunpack.c.l.b16 %v574
        %v617 = vunpack.c.h.b16 %v574
        %v618 = vunpack.c.l.b16 %v575
        %v619 = vunpack.c.h.b16 %v575
        %v620 = vunpack.c.l.b16 %v576
        %v621 = vunpack.c.h.b16 %v576
        %v622 = vunpack.c.l.b16 %v577
        %v623 = vunpack.c.h.b16 %v577
        %v624 = vunpack.c.l.b16 %v578
        %v625 = vunpack.c.h.b16 %v578
        %v626 = vunpack.c.l.b16 %v579
        %v627 = vunpack.c.h.b16 %v579
        %v628 = vunpack.c.l.b16 %v580
        %v629 = vunpack.c.h.b16 %v580
        %v630 = vunpack.c.l.b16 %v581
        %v631 = vunpack.c.h.b16 %v581
        %v632 = vunpack.c.l.b16 %v582
        %v633 = vunpack.c.h.b16 %v582
        %v634 = vunpack.c.l.b16 %v583
        %v635 = vunpack.c.h.b16 %v583
        %v636 = vunpack.c.l.b16 %v584
        %v637 = vunpack.c.h.b16 %v584
        %v638 = vunpack.c.l.b16 %v585
        %v639 = vunpack.c.h.b16 %v585
        %v640 = vpack.c.b16 %v610, %v608
        %v641 = vpack.c.b16 %v611, %v609
        %v642 = vpack.c.b16 %v614, %v612
        %v643 = vpack.c.b16 %v615, %v613
        %v644 = vpack.c.b16 %v618, %v616
        %v645 = vpack.c.b16 %v619, %v617
        %v646 = vpack.c.b16 %v622, %v620
        %v647 = vpack.c.b16 %v623, %v621
        %v648 = vpack.c.b16 %v626, %v624
        %v649 = vpack.c.b16 %v627, %v625
        %v650 = vpack.c.b16 %v630, %v628
        %v651 = vpack.c.b16 %v631, %v629
        %v652 = vpack.c.b16 %v634, %v632
        %v653 = vpack.c.b16 %v635, %v633
        %v654 = vpack.c.b16 %v638, %v636
        %v655 = vpack.c.b16 %v639, %v637
        %672 = vmatpush.bf16.msra.mxu0 %v654
        %673 = vmatpush.bf16.msra.mxu0 %v652
        %674 = vmatpush.bf16.msra.mxu0 %v650
        %675 = vmatpush.bf16.msra.mxu0 %v648
        %676 = vmatpush.bf16.msra.mxu0 %v646
        %677 = vmatpush.bf16.msra.mxu0 %v644
        %678 = vmatpush.bf16.msra.mxu0 %v642
        %679 = vmatpush.bf16.msra.mxu0 %v640
        %680 = vmatmul.bf16.gmra.mxu0 %v569
        %v681 = vpop.f32.mrf.mxu0
        %v682 = vadd.f32 %v588, %v681
        %v683 = vpop.f32.mrf.mxu0
        %684 = vdwg.mxu0
        %685 = vmatpush.bf16.msra.mxu0 %v655
        %686 = vmatpush.bf16.msra.mxu0 %v653
        %687 = vmatpush.bf16.msra.mxu0 %v651
        %688 = vmatpush.bf16.msra.mxu0 %v649
        %689 = vmatpush.bf16.msra.mxu0 %v647
        %690 = vmatpush.bf16.msra.mxu0 %v645
        %691 = vmatpush.bf16.msra.mxu0 %v643
        %692 = vmatpush.bf16.msra.mxu0 %v641
        %693 = vmatmul.bf16.gmra.mxu0 %v569
        %v694 = vpop.f32.mrf.mxu0
        %v695 = vadd.f32 %v589, %v694
        %v696 = vpop.f32.mrf.mxu0
        %697 = vdwg.mxu0
        %v698 = vmax.f32 %v682, 0.0
        %v699 = vmax.f32 %v695, 0.0
        %v700 = vpack.c.bf16 %v698, %v698
        %v701 = vpack.c.bf16 %v699, %v699
        %v702 = vld [vmem:[#allocation9] sm:$0xf]
        %v703 = vld [vmem:[#allocation9 + $0x4] sm:$0xf]
        %v704 = vld [vmem:[#allocation9 + $0x8] sm:$0xf]
        %v705 = vld [vmem:[#allocation9 + $0xc] sm:$0xf]
        %v706 = vld [vmem:[#allocation9 + $0x10] sm:$0xf]
        %v707 = vld [vmem:[#allocation9 + $0x14] sm:$0xf]
        %v708 = vld [vmem:[#allocation9 + $0x18] sm:$0xf]
        %v709 = vld [vmem:[#allocation9 + $0x1c] sm:$0xf]
        %v710 = vld [vmem:[#allocation9 + $0x20] sm:$0xf]
        %v711 = vld [vmem:[#allocation9 + $0x24] sm:$0xf]
        %v712 = vld [vmem:[#allocation9 + $0x28] sm:$0xf]
        %v713 = vld [vmem:[#allocation9 + $0x2c] sm:$0xf]
        %v714 = vld [vmem:[#allocation9 + $0x30] sm:$0xf]
        %v715 = vld [vmem:[#allocation9 + $0x34] sm:$0xf]
        %v716 = vld [vmem:[#allocation9 + $0x38] sm:$0xf]
        %v717 = vld [vmem:[#allocation9 + $0x3c] sm:$0xf]
        %v718 = vld [vmem:[#allocation9 + $0x40] sm:$0xf]
        %v719 = vld [vmem:[#allocation9 + $0x44] sm:$0xf]
        %v720 = vld [vmem:[#allocation9 + $0x48] sm:$0xf]
        %v721 = vld [vmem:[#allocation9 + $0x4c] sm:$0xf]
        %v722 = vld [vmem:[#allocation9 + $0x50] sm:$0xf]
        %v723 = vld [vmem:[#allocation9 + $0x54] sm:$0xf]
        %v724 = vld [vmem:[#allocation9 + $0x58] sm:$0xf]
        %v725 = vld [vmem:[#allocation9 + $0x5c] sm:$0xf]
        %v726 = vld [vmem:[#allocation9 + $0x60] sm:$0xf]
        %v727 = vld [vmem:[#allocation9 + $0x64] sm:$0xf]
        %v728 = vld [vmem:[#allocation9 + $0x68] sm:$0xf]
        %v729 = vld [vmem:[#allocation9 + $0x6c] sm:$0xf]
        %v730 = vld [vmem:[#allocation9 + $0x70] sm:$0xf]
        %v731 = vld [vmem:[#allocation9 + $0x74] sm:$0xf]
        %v732 = vld [vmem:[#allocation9 + $0x78] sm:$0xf]
        %v733 = vld [vmem:[#allocation9 + $0x7c] sm:$0xf]
        %v734 = vld [vmem:[%s6] sm:$0x1]
        %v736 = vperm.slane %v734, 0
        %v770 = vunpack.c.l.b16 %v702
        %v771 = vunpack.c.l.b16 %v703
        %v772 = vunpack.c.l.b16 %v704
        %v773 = vunpack.c.l.b16 %v705
        %v774 = vunpack.c.l.b16 %v706
        %v775 = vunpack.c.l.b16 %v707
        %v776 = vunpack.c.l.b16 %v708
        %v777 = vunpack.c.l.b16 %v709
        %v778 = vunpack.c.l.b16 %v710
        %v779 = vunpack.c.l.b16 %v711
        %v780 = vunpack.c.l.b16 %v712
        %v781 = vunpack.c.l.b16 %v713
        %v782 = vunpack.c.l.b16 %v714
        %v783 = vunpack.c.l.b16 %v715
        %v784 = vunpack.c.l.b16 %v716
        %v785 = vunpack.c.l.b16 %v717
        %v786 = vunpack.c.l.b16 %v718
        %v787 = vunpack.c.l.b16 %v719
        %v788 = vunpack.c.l.b16 %v720
        %v789 = vunpack.c.l.b16 %v721
        %v790 = vunpack.c.l.b16 %v722
        %v791 = vunpack.c.l.b16 %v723
        %v792 = vunpack.c.l.b16 %v724
        %v793 = vunpack.c.l.b16 %v725
        %v794 = vunpack.c.l.b16 %v726
        %v795 = vunpack.c.l.b16 %v727
        %v796 = vunpack.c.l.b16 %v728
        %v797 = vunpack.c.l.b16 %v729
        %v798 = vunpack.c.l.b16 %v730
        %v799 = vunpack.c.l.b16 %v731
        %v800 = vunpack.c.l.b16 %v732
        %v801 = vunpack.c.l.b16 %v733
        %v802 = vpack.c.b16 %v771, %v770
        %v803 = vpack.c.b16 %v773, %v772
        %v804 = vpack.c.b16 %v775, %v774
        %v805 = vpack.c.b16 %v777, %v776
        %v806 = vpack.c.b16 %v779, %v778
        %v807 = vpack.c.b16 %v781, %v780
        %v808 = vpack.c.b16 %v783, %v782
        %v809 = vpack.c.b16 %v785, %v784
        %v810 = vpack.c.b16 %v787, %v786
        %v811 = vpack.c.b16 %v789, %v788
        %v812 = vpack.c.b16 %v791, %v790
        %v813 = vpack.c.b16 %v793, %v792
        %v814 = vpack.c.b16 %v795, %v794
        %v815 = vpack.c.b16 %v797, %v796
        %v816 = vpack.c.b16 %v799, %v798
        %v817 = vpack.c.b16 %v801, %v800
        %834 = vmatpush.bf16.msra.mxu0 %v809
        %835 = vmatpush.bf16.msra.mxu0 %v808
        %836 = vmatpush.bf16.msra.mxu0 %v807
        %837 = vmatpush.bf16.msra.mxu0 %v806
        %838 = vmatpush.bf16.msra.mxu0 %v805
        %839 = vmatpush.bf16.msra.mxu0 %v804
        %840 = vmatpush.bf16.msra.mxu0 %v803
        %841 = vmatpush.bf16.msra.mxu0 %v802
        %842 = vmatmul.bf16.gmra.mxu0 %v700
        %v843 = vpop.f32.mrf.mxu0
        %v844 = vadd.f32 %v736, %v843
        %v845 = vpop.f32.mrf.mxu0
        %846 = vdwg.mxu0
        %847 = vmatpush.bf16.msra.mxu0 %v817
        %848 = vmatpush.bf16.msra.mxu0 %v816
        %849 = vmatpush.bf16.msra.mxu0 %v815
        %850 = vmatpush.bf16.msra.mxu0 %v814
        %851 = vmatpush.bf16.msra.mxu0 %v813
        %852 = vmatpush.bf16.msra.mxu0 %v812
        %853 = vmatpush.bf16.msra.mxu0 %v811
        %854 = vmatpush.bf16.msra.mxu0 %v810
        %855 = vmatmul.bf16.gmra.mxu0 %v701
        %v856 = vpop.f32.mrf.mxu0
        %v857 = vadd.f32 %v844, %v856
        %v858 = vpop.f32.mrf.mxu0
        %859 = vdwg.mxu0
        %v860 = vmul.f32 %v857, 0.5
        %v861 = vadd.f32 %v568, %v860
        %v862 = vpack.c.bf16 %v861, %v861
        %v863 = vld [vmem:[#allocation10] sm:$0xf]
        %v864 = vld [vmem:[#allocation10 + $0x4] sm:$0xf]
        %v865 = vld [vmem:[#allocation10 + $0x8] sm:$0xf]
        %v866 = vld [vmem:[#allocation10 + $0xc] sm:$0xf]
        %v867 = vld [vmem:[#allocation10 + $0x10] sm:$0xf]
        %v868 = vld [vmem:[#allocation10 + $0x14] sm:$0xf]
        %v869 = vld [vmem:[#allocation10 + $0x18] sm:$0xf]
        %v870 = vld [vmem:[#allocation10 + $0x1c] sm:$0xf]
        %v871 = vld [vmem:[#allocation10 + $0x20] sm:$0xf]
        %v872 = vld [vmem:[#allocation10 + $0x24] sm:$0xf]
        %v873 = vld [vmem:[#allocation10 + $0x28] sm:$0xf]
        %v874 = vld [vmem:[#allocation10 + $0x2c] sm:$0xf]
        %v875 = vld [vmem:[#allocation10 + $0x30] sm:$0xf]
        %v876 = vld [vmem:[#allocation10 + $0x34] sm:$0xf]
        %v877 = vld [vmem:[#allocation10 + $0x38] sm:$0xf]
        %v878 = vld [vmem:[#allocation10 + $0x3c] sm:$0xf]
        %v879 = vld [vmem:[%s8] sm:$0x1]
        %v881 = vperm.slane %v879, 0
        %v899 = vunpack.c.l.b16 %v863
        %v900 = vunpack.c.l.b16 %v864
        %v901 = vunpack.c.l.b16 %v865
        %v902 = vunpack.c.l.b16 %v866
        %v903 = vunpack.c.l.b16 %v867
        %v904 = vunpack.c.l.b16 %v868
        %v905 = vunpack.c.l.b16 %v869
        %v906 = vunpack.c.l.b16 %v870
        %v907 = vunpack.c.l.b16 %v871
        %v908 = vunpack.c.l.b16 %v872
        %v909 = vunpack.c.l.b16 %v873
        %v910 = vunpack.c.l.b16 %v874
        %v911 = vunpack.c.l.b16 %v875
        %v912 = vunpack.c.l.b16 %v876
        %v913 = vunpack.c.l.b16 %v877
        %v914 = vunpack.c.l.b16 %v878
        %v915 = vpack.c.b16 %v900, %v899
        %v916 = vpack.c.b16 %v902, %v901
        %v917 = vpack.c.b16 %v904, %v903
        %v918 = vpack.c.b16 %v906, %v905
        %v919 = vpack.c.b16 %v908, %v907
        %v920 = vpack.c.b16 %v910, %v909
        %v921 = vpack.c.b16 %v912, %v911
        %v922 = vpack.c.b16 %v914, %v913
        %931 = vmatpush.bf16.msra.mxu0 %v922
        %932 = vmatpush.bf16.msra.mxu0 %v921
        %933 = vmatpush.bf16.msra.mxu0 %v920
        %934 = vmatpush.bf16.msra.mxu0 %v919
        %935 = vmatpush.bf16.msra.mxu0 %v918
        %936 = vmatpush.bf16.msra.mxu0 %v917
        %937 = vmatpush.bf16.msra.mxu0 %v916
        %938 = vmatpush.bf16.msra.mxu0 %v915
        %939 = vmatmul.bf16.gmra.mxu0 %v862
        %v940 = vpop.f32.mrf.mxu0
        %v941 = vadd.f32 %v881, %v940
        %v942 = vpop.f32.mrf.mxu0
        %943 = vdwg.mxu0
        %v944 = vpack.c.bf16 %v941, %v941
        %945 = vst [vmem:[%s464] sm:$0xf] %v944
        %p946 = scmp.lt.s32.totalorder %s28, 1
        %s947 = scalar_select %p946, %s28, 1
        %s948 = smul.addr %s947, 4
        %s949 = scalar_lea.vmem %s9, %s948
        %p950 = scmp.lt.s32.totalorder %s28, 1
        %s951 = scalar_select %p950, %s28, 1
        %s952 = smul.addr %s951, 8
        %s953 = scalar_lea.vmem %s10, %s952
        // Predicated region
        $region81: #{indic_conformer_feature.1} parent=55 // pred_check
          %p954 = pneg %p240
        $region82: #{indic_conformer_feature.1} parent=55 // pred_check_branch
          %956 = sbr.rel (%p954) target = $region84
        $region83: #{indic_conformer_feature.1} parent=55 // pred_region
          _
        $region84: #{indic_conformer_feature.1} parent=55 // pred_fallthru
          _
        // Predicated region
        $region85: #{indic_conformer_feature.1} parent=55 // pred_check
          %p957 = pneg %p266
        $region86: #{indic_conformer_feature.1} parent=55 // pred_check_branch
          %959 = sbr.rel (%p957) target = $region88
        $region87: #{indic_conformer_feature.1} parent=55 // pred_region
          _
        $region88: #{indic_conformer_feature.1} parent=55 // pred_fallthru
          _
      $region56: #{indic_conformer_feature.1} parent=5 // pred_fallthru
        _
      %p960 = scmp.le.s32.totalorder 2, %s23
      // Predicated region
      $region89: #{indic_conformer_feature.1} parent=5 // pred_check
        %p961 = pneg %p960
      $region90: #{indic_conformer_feature.1} parent=5 // pred_check_branch
        %963 = sbr.rel (%p961) target = $region92
      $region91: #{indic_conformer_feature.1} parent=5 // pred_region
        %s964 = ssub.s32 %s23, 2
        // Predicated region
        $region93: #{indic_conformer_feature.1} parent=91 // pred_check
          %p965 = pneg %p246
        $region94: #{indic_conformer_feature.1} parent=91 // pred_check_branch
          %967 = sbr.rel (%p965) target = $region96
        $region95: #{indic_conformer_feature.1} parent=91 // pred_region
          %p968 = scmp.lt.s32.totalorder %s29, 1
          %s969 = scalar_select %p968, %s29, 1
          %s970 = smul.addr %s969, 4
          %s971 = scalar_lea.vmem %s9, %s970
        $region96: #{indic_conformer_feature.1} parent=91 // pred_fallthru
          _
        // Predicated region
        $region97: #{indic_conformer_feature.1} parent=91 // pred_check
          %p972 = pneg %p272
        $region98: #{indic_conformer_feature.1} parent=91 // pred_check_branch
          %974 = sbr.rel (%p972) target = $region100
        $region99: #{indic_conformer_feature.1} parent=91 // pred_region
          %p975 = scmp.lt.s32.totalorder %s29, 1
          %s976 = scalar_select %p975, %s29, 1
          %s977 = smul.addr %s976, 8
          %s978 = scalar_lea.vmem %s10, %s977
        $region100: #{indic_conformer_feature.1} parent=91 // pred_fallthru
          _
      $region92: #{indic_conformer_feature.1} parent=5 // pred_fallthru
        _
    $region6: #{indic_conformer_feature.1} parent=1 // loop_footer
      %s27 = sadd.s32 1, %s23
    $region7: #{indic_conformer_feature.1} parent=1 // loop_footer_branch
      %22 = sbr.rel target = $region3
    $region8: #{indic_conformer_feature.1} parent=1 // loop_exit
      _
    %979 = vsyncpa [#allocation3], 1
    %s980 = scalar_lea.sflag [#allocation3], 1
    %981 = vsyncpa %s980, 1
    %982 = vsyncpa [#allocation5], 1
    %983 = vsyncpa [#allocation8], 1
    %984 = vsyncpa [#allocation11], 1

</llo_original>
